<compile_context>
chip_gen: v7x
topology: tpu7x:2x2x1
jax: 0.10.0
libtpu: 0.0.40
codegen_flags: <defaults>
</compile_context>

<pallas_src>
import functools

import jax
import jax.numpy as jnp
import numpy as np
from jax.experimental import pallas as pl
from jax.experimental.pallas import tpu as pltpu

HIDDEN = 128
DROP_P = 0.6
assert 0.0 <= DROP_P < 1.0, "DROP_P must be in [0,1); p==1 would wrap the u32 threshold"
# keep iff hash-u32 >= p * 2^32   (P(keep) = 1 - p)
_DROP_THRESH = np.uint32(int(round(DROP_P * (1 << 32))))  # numpy scalar -> jaxpr literal
_KEEP_SCALE = 1.0 / (1.0 - DROP_P)                        # python float  -> weak literal


def _dropout_keep_mask(seed_u32, shape):
    """Deterministic Bernoulli(keep = 1-p) mask from a murmur3-style hash.

    Pure jnp uint32 ops -> lowers on Mosaic TPU and in interpret mode alike,
    and can be replayed outside the kernel for testing.
    TODO(synk): torch's dropout RNG stream cannot be reproduced bit-exactly;
    this provides an equivalent Bernoulli(keep=0.4) mask.
    """
    rows = jax.lax.broadcasted_iota(jnp.int32, shape, 0).astype(jnp.uint32)
    cols = jax.lax.broadcasted_iota(jnp.int32, shape, 1).astype(jnp.uint32)
    x = rows * jnp.uint32(shape[1]) + cols
    x = x + seed_u32 * jnp.uint32(0x9E3779B9)
    x = x ^ (x >> 16)
    x = x * jnp.uint32(0x85EBCA6B)
    x = x ^ (x >> 13)
    x = x * jnp.uint32(0xC2B2AE35)
    x = x ^ (x >> 16)
    return x >= _DROP_THRESH


def _policy_kernel(seed_ref,                               # SMEM [1] int32
                   x_ref, w1_ref, b1_ref, w2_ref, b2_ref,  # VMEM
                   out_ref,                                # VMEM
                   *, training: bool):
    # affine1: [B, in] . [in, 128] -> [B, 128]  (w1 stored lane-dense, no transpose)
    h = jax.lax.dot_general(
        x_ref[...], w1_ref[...],
        dimension_numbers=(((1,), (0,)), ((), ())),
        preferred_element_type=jnp.float32) + b1_ref[...]

    if training:
        # Dropout(p=0.6): zero with prob p.  The 1/(1-p) rescale is folded onto
        # the (smaller) affine2 output below -- valid because ReLU is positively
        # homogeneous and the mask is 0/1.
        # TODO(synk): if a batch grid is added, reseed with seed + pl.program_id(0)
        # so tiles don't share the identical mask pattern.
        keep = _dropout_keep_mask(seed_ref[0].astype(jnp.uint32), h.shape)
        h = jnp.where(keep, h, 0.0)
    # (eval mode: dropout is identity)

    # ReLU
    h = jnp.maximum(h, 0.0)

    # affine2: [B, 128] . [out2, 128]  (contract feature axes) -> [B, out2]
    out = jax.lax.dot_general(
        h, w2_ref[...],
        dimension_numbers=(((1,), (1,)), ((), ())),
        preferred_element_type=jnp.float32)
    if training:
        out = out * _KEEP_SCALE
    out_ref[...] = (out + b2_ref[...]).astype(out_ref.dtype)


@functools.partial(jax.jit, static_argnames=("training",))
def policy_forward(x, params, seed, *, training: bool = True):
    """Policy forward pass in one Pallas TPU kernel.

    x:      [B, input_size] float32
    params: dict with w1 [input_size, 128], b1 [1, 128],
                      w2 [2*output_size, 128], b2 [1, 2*output_size]
    seed:   int32 device array of shape [1] (supply a fresh value per step)
    returns action_scores [B, 2*output_size] float32
    """
    w1, b1, w2, b2 = params["w1"], params["b1"], params["w2"], params["b2"]
    B = x.shape[0]
    out2 = w2.shape[0]

    # Keep the batch a multiple of 8 (f32 sublane count): unmasked VPU ops/store.
    B_pad = ((B + 7) // 8) * 8
    if B_pad != B:
        x = jnp.pad(x, ((0, B_pad - B), (0, 0)))

    kernel = functools.partial(_policy_kernel, training=training)

    vmem = pl.BlockSpec(memory_space=pltpu.MemorySpace.VMEM)
    smem = pl.BlockSpec(memory_space=pltpu.MemorySpace.SMEM)

    # Gridless: whole-array blocks, one DMA per operand, minimum fixed overhead.
    # TODO(synk): if B grows to thousands of rows, switch to grid=(pl.cdiv(B,TB),),
    # give the weights constant index_maps (lambda i: (0, 0)) so they are DMA'd
    # once and stay VMEM-resident, mark the batch axis "parallel" (v7x dual TC),
    # size TB against v7x's 64 MiB VMEM (not v6e/v5e's 128 MiB), and reseed the
    # dropout hash per tile with pl.program_id(0).
    out = pl.pallas_call(
        kernel,
        out_shape=jax.ShapeDtypeStruct((B_pad, out2), jnp.float32),
        in_specs=[smem, vmem, vmem, vmem, vmem, vmem],
        out_specs=vmem,
    )(seed, x, w1, b1, w2, b2)

    if B_pad != B:
        out = out[:B]
    return out


def init_policy_params(key, input_size, output_size):
    """Deterministic init mirroring nn.Linear's U(-1/sqrt(fan_in), 1/sqrt(fan_in)).

    w1 is stored pre-transposed as [input_size, 128] (lane-dense); biases are
    stored as [1, out] so the kernel needs no per-call reshapes/transposes.
    """
    k1, k2, k3, k4 = jax.random.split(key, 4)
    lim1 = 1.0 / float(np.sqrt(input_size))
    lim2 = 1.0 / float(np.sqrt(HIDDEN))
    return {
        "w1": jax.random.uniform(k1, (input_size, HIDDEN), jnp.float32, -lim1, lim1),
        "b1": jax.random.uniform(k2, (1, HIDDEN), jnp.float32, -lim1, lim1),
        "w2": jax.random.uniform(k3, (output_size * 2, HIDDEN), jnp.float32, -lim2, lim2),
        "b2": jax.random.uniform(k4, (1, output_size * 2), jnp.float32, -lim2, lim2),
    }


if __name__ == "__main__":
    key = jax.random.PRNGKey(0)
    kp, kx = jax.random.split(key)

    batch = 8
    input_size = 16
    output_size = 4      # -> action_scores has 2*output_size = 8 columns

    params = init_policy_params(kp, input_size, output_size)
    x = jax.random.normal(kx, (batch, input_size), jnp.float32)
    seed = jnp.array([1234], dtype=jnp.int32)   # vary per step in real training

    # Training-mode forward (dropout active, as in a freshly-constructed nn.Module).
    out = jax.block_until_ready(policy_forward(x, params, seed, training=True))
    assert out.shape == (batch, 2 * output_size)
    assert out.dtype == jnp.float32
    assert bool(jnp.all(jnp.isfinite(out)))

    # Training-mode check: replay the same deterministic hash mask in plain JAX.
    keep = _dropout_keep_mask(jnp.uint32(1234), (batch, HIDDEN))
    h_ref = x @ params["w1"] + params["b1"]
    h_ref = jnp.maximum(jnp.where(keep, h_ref, 0.0), 0.0)
    ref_train = (h_ref @ params["w2"].T) * _KEEP_SCALE + params["b2"]
    assert jnp.allclose(out, ref_train, atol=1e-4, rtol=1e-4)

    # Eval-mode sanity check against a plain-JAX reference (dropout = identity).
    out_eval = jax.block_until_ready(policy_forward(x, params, seed, training=False))
    ref_eval = (jnp.maximum(x @ params["w1"] + params["b1"], 0.0)
                @ params["w2"].T + params["b2"])
    assert jnp.allclose(out_eval, ref_eval, atol=1e-5, rtol=1e-5)

    print("KERNEL_OK")
</pallas_src>

<mosaic_0001>
module attributes {stable_mosaic.version = 11 : i64} {
  func.func @_policy_kernel(%arg0: memref<1xi32, #tpu.memory_space<smem>>, %arg1: memref<8x16xf32, #tpu.memory_space<vmem>>, %arg2: memref<16x128xf32, #tpu.memory_space<vmem>>, %arg3: memref<1x128xf32, #tpu.memory_space<vmem>>, %arg4: memref<8x128xf32, #tpu.memory_space<vmem>>, %arg5: memref<1x8xf32, #tpu.memory_space<vmem>>, %arg6: memref<8x8xf32, #tpu.memory_space<vmem>>) attributes {dimension_semantics = [], scalar_prefetch = 0 : i64, scratch_operands = 0 : i64, tpu.core_type = #tpu.core_type<tc>} {
    %c0 = arith.constant 0 : index
    %c0_0 = arith.constant 0 : index
    %0 = vector.load %arg1[%c0, %c0_0] : memref<8x16xf32, #tpu.memory_space<vmem>>, vector<8x16xf32>
    %c0_1 = arith.constant 0 : index
    %c0_2 = arith.constant 0 : index
    %1 = vector.load %arg2[%c0_1, %c0_2] : memref<16x128xf32, #tpu.memory_space<vmem>>, vector<16x128xf32>
    %cst = arith.constant dense<0.000000e+00> : vector<8x128xf32>
    %2 = tpu.matmul %0, %1, %cst {dimension_numbers = #tpu.dot_dimension_numbers<[1], [0], [0], [1], [0, 0, 1, 1], [], []>} : vector<8x16xf32>, vector<16x128xf32>, vector<8x128xf32> -> vector<8x128xf32>
    %c0_3 = arith.constant 0 : index
    %c0_4 = arith.constant 0 : index
    %3 = vector.load %arg3[%c0_3, %c0_4] : memref<1x128xf32, #tpu.memory_space<vmem>>, vector<1x128xf32>
    %4 = vector.broadcast %3 : vector<1x128xf32> to vector<8x128xf32>
    %5 = arith.addf %2, %4 : vector<8x128xf32>
    %c0_5 = arith.constant 0 : index
    %6 = memref.load %arg0[%c0_5] : memref<1xi32, #tpu.memory_space<smem>>
    %7 = tpu.iota {dimensions = array<i32: 0>} : vector<8x128xi32>
    %8 = tpu.iota {dimensions = array<i32: 1>} : vector<8x128xi32>
    %c128_i32 = arith.constant 128 : i32
    %9 = vector.broadcast %c128_i32 : i32 to vector<8x128xi32>
    %10 = arith.muli %7, %9 : vector<8x128xi32>
    %11 = arith.addi %10, %8 : vector<8x128xi32>
    %c-1640531527_i32 = arith.constant -1640531527 : i32
    %12 = arith.muli %6, %c-1640531527_i32 : i32
    %13 = vector.broadcast %12 : i32 to vector<8x128xi32>
    %14 = arith.addi %11, %13 : vector<8x128xi32>
    %c16_i32 = arith.constant 16 : i32
    %15 = vector.broadcast %c16_i32 : i32 to vector<8x128xi32>
    %16 = arith.shrui %14, %15 : vector<8x128xi32>
    %17 = arith.xori %14, %16 : vector<8x128xi32>
    %c-2048144789_i32 = arith.constant -2048144789 : i32
    %18 = vector.broadcast %c-2048144789_i32 : i32 to vector<8x128xi32>
    %19 = arith.muli %17, %18 : vector<8x128xi32>
    %c13_i32 = arith.constant 13 : i32
    %20 = vector.broadcast %c13_i32 : i32 to vector<8x128xi32>
    %21 = arith.shrui %19, %20 : vector<8x128xi32>
    %22 = arith.xori %19, %21 : vector<8x128xi32>
    %c-1028477387_i32 = arith.constant -1028477387 : i32
    %23 = vector.broadcast %c-1028477387_i32 : i32 to vector<8x128xi32>
    %24 = arith.muli %22, %23 : vector<8x128xi32>
    %c16_i32_6 = arith.constant 16 : i32
    %25 = vector.broadcast %c16_i32_6 : i32 to vector<8x128xi32>
    %26 = arith.shrui %24, %25 : vector<8x128xi32>
    %27 = arith.xori %24, %26 : vector<8x128xi32>
    %c-1717986918_i32 = arith.constant -1717986918 : i32
    %28 = vector.broadcast %c-1717986918_i32 : i32 to vector<8x128xi32>
    %29 = arith.cmpi uge, %27, %28 : vector<8x128xi32>
    %cst_7 = arith.constant 0.000000e+00 : f32
    %30 = vector.broadcast %cst_7 : f32 to vector<8x128xf32>
    %31 = arith.select %29, %5, %30 : vector<8x128xi1>, vector<8x128xf32>
    %cst_8 = arith.constant 0.000000e+00 : f32
    %32 = vector.broadcast %cst_8 : f32 to vector<8x128xf32>
    %33 = arith.maximumf %31, %32 : vector<8x128xf32>
    %c0_9 = arith.constant 0 : index
    %c0_10 = arith.constant 0 : index
    %34 = vector.load %arg4[%c0_9, %c0_10] : memref<8x128xf32, #tpu.memory_space<vmem>>, vector<8x128xf32>
    %cst_11 = arith.constant dense<0.000000e+00> : vector<8x8xf32>
    %35 = tpu.matmul %33, %34, %cst_11 {dimension_numbers = #tpu.dot_dimension_numbers<[1], [1], [0], [0], [0, 0, 1, 0], [], []>} : vector<8x128xf32>, vector<8x128xf32>, vector<8x8xf32> -> vector<8x8xf32>
    %cst_12 = arith.constant 2.500000e+00 : f32
    %36 = vector.broadcast %cst_12 : f32 to vector<8x8xf32>
    %37 = arith.mulf %35, %36 : vector<8x8xf32>
    %c0_13 = arith.constant 0 : index
    %c0_14 = arith.constant 0 : index
    %38 = vector.load %arg5[%c0_13, %c0_14] : memref<1x8xf32, #tpu.memory_space<vmem>>, vector<1x8xf32>
    %39 = vector.broadcast %38 : vector<1x8xf32> to vector<8x8xf32>
    %40 = arith.addf %37, %39 : vector<8x8xf32>
    %c0_15 = arith.constant 0 : index
    %c0_16 = arith.constant 0 : index
    %41 = vector.load %arg6[%c0_15, %c0_16] : memref<8x8xf32, #tpu.memory_space<vmem>>, vector<8x8xf32>
    tpu.vector_store %arg6[%c0_15, %c0_16], %40 {strides = array<i32>} : memref<8x8xf32, #tpu.memory_space<vmem>>, vector<8x8xf32>,
    return
  }
}

</mosaic_0001>

<llo_original>
// kernel: policy_forward.1
$region0: #{policy_forward.1}
  #allocation0 [shape = 'u32[]', space=smem, size = 0x4, offset = 0x4, fixed_abs, tag = 'smem constant byte address 0x4 - core index']
  #allocation1 [shape = 'u32[144,128]{1,0:T(1,128)}', space=vmem, size = 0x12000, scoped, tag = 'internal scratch']
  #allocation2 [shape = 's32[1]{0:T(128)S(6)}', space=smem, size = 0x200, scoped, tag = 'scoped memory for policy_forward.1']
  %s0 = inlined_call_operand.<no memory space> [shape: s32[1], index: 0, kind: input, shape index: {}]
  %s1 = inlined_call_operand.hbm [shape: f32[8,16], index: 1, kind: input, shape index: {}]
  %s2 = inlined_call_operand.hbm [shape: f32[16,128], index: 2, kind: input, shape index: {}]
  %s3 = inlined_call_operand.vmem [shape: f32[1,128], index: 3, kind: input, shape index: {}]
  %s4 = inlined_call_operand.vmem [shape: f32[8,128], index: 4, kind: input, shape index: {}]
  %s5 = inlined_call_operand.vmem [shape: f32[1,8], index: 5, kind: input, shape index: {}]
  %s6 = inlined_call_operand.hbm [shape: f32[8,8], index: 6, kind: output, shape index: {}]
  %s7 = sld [smem:[#allocation0]]
  $region42: #{policy_forward.1} parent=0
    _
  %s9 = ssub.s32 1, %s7
  %s10 = scalar_select 0, %s9, %s7
  %11 = sst [smem:[#allocation2]] %s0
  $region1: #{policy_forward.1} parent=0
    #allocation3 [shape = 'u8[4096]{0}', space=vmem, size = 0x1000, scoped, tag = 'input window, operand 1, single buffered']
    #allocation4 [shape = 's32[1]{0}', space=sflag, size = 0x4, scoped, tag = 'scoped memory for policy_forward.1']
    #allocation5 [shape = 's32[1]{0}', space=sflag, size = 0x4, scoped, tag = 'scoped memory for policy_forward.1']
    #allocation6 [shape = 'u8[8192]{0}', space=vmem, size = 0x2000, scoped, tag = 'input window, operand 2, single buffered']
    #allocation7 [shape = 's32[1]{0}', space=sflag, size = 0x4, scoped, tag = 'scoped memory for policy_forward.1']
    #allocation8 [shape = 'u8[4096]{0}', space=vmem, size = 0x1000, scoped, tag = 'output window, operand 0, single buffered']
    %12 = vsyncpa [#allocation4], 0
    %13 = vsyncpa [#allocation7], 0
    %14 = vsyncpa [#allocation5], 0
    // Predicated region
    $region2: #{policy_forward.1} parent=1 // pred_check
      _
    $region3: #{policy_forward.1} parent=1 // pred_check_branch
      %16 = sbr.rel (0) target = $region5
    $region4: #{policy_forward.1} parent=1 // pred_region
      _
    $region5: #{policy_forward.1} parent=1 // pred_fallthru
      _
    // Predicated region
    $region6: #{policy_forward.1} parent=1 // pred_check
      _
    $region7: #{policy_forward.1} parent=1 // pred_check_branch
      %18 = sbr.rel (0) target = $region9
    $region8: #{policy_forward.1} parent=1 // pred_region
      %s20 = ssub.s32 128, 128
      %21 = vsyncadd [#allocation4], %s20
      %s23 = sshll.u32 [#allocation3], 4
      %s24 = int_to_ptr.vmem [resolvable:$true] %s23
      %26 = dma.hbm_to_vmem [thread:$0]  %s1, 128, %s24, [#allocation4]
    $region9: #{policy_forward.1} parent=1 // pred_fallthru
      _
    // Predicated region
    $region10: #{policy_forward.1} parent=1 // pred_check
      _
    $region11: #{policy_forward.1} parent=1 // pred_check_branch
      %28 = sbr.rel (0) target = $region13
    $region12: #{policy_forward.1} parent=1 // pred_region
      %s30 = ssub.s32 256, 256
      %31 = vsyncadd [#allocation7], %s30
      %s32 = sshll.u32 [#allocation6], 4
      %s33 = int_to_ptr.vmem [resolvable:$true] %s32
      %38 = dma.hbm_to_vmem [thread:$0]  %s2, 256, %s33, [#allocation7], 128, 128, 8
    $region13: #{policy_forward.1} parent=1 // pred_fallthru
      _
    // Predicated region
    $region14: #{policy_forward.1} parent=1 // pred_check
      _
    $region15: #{policy_forward.1} parent=1 // pred_check_branch
      %40 = sbr.rel (0) target = $region17
    $region16: #{policy_forward.1} parent=1 // pred_region
      _
    $region17: #{policy_forward.1} parent=1 // pred_fallthru
      _
    // Predicated region
    $region18: #{policy_forward.1} parent=1 // pred_check
      _
    $region19: #{policy_forward.1} parent=1 // pred_check_branch
      %42 = sbr.rel (0) target = $region21
    $region20: #{policy_forward.1} parent=1 // pred_region
      _
    $region21: #{policy_forward.1} parent=1 // pred_fallthru
      _
    // Predicated region
    $region22: #{policy_forward.1} parent=1 // pred_check
      _
    $region23: #{policy_forward.1} parent=1 // pred_check_branch
      %44 = sbr.rel (0) target = $region25
    $region24: #{policy_forward.1} parent=1 // pred_region
      _
    $region25: #{policy_forward.1} parent=1 // pred_fallthru
      _
    // Predicated region
    $region26: #{policy_forward.1} parent=1 // pred_check
      _
    $region27: #{policy_forward.1} parent=1 // pred_check_branch
      %46 = sbr.rel (0) target = $region29
    $region28: #{policy_forward.1} parent=1 // pred_region
      %47 = dma.done [#allocation4], 128
    $region29: #{policy_forward.1} parent=1 // pred_fallthru
      _
    // Predicated region
    $region30: #{policy_forward.1} parent=1 // pred_check
      _
    $region31: #{policy_forward.1} parent=1 // pred_check_branch
      %49 = sbr.rel (0) target = $region33
    $region32: #{policy_forward.1} parent=1 // pred_region
      %50 = dma.done [#allocation7], 256
    $region33: #{policy_forward.1} parent=1 // pred_fallthru
      _
    %v51 = vld [vmem:[#allocation3] sm:$0xff]
    %v52 = vld [vmem:[#allocation6] sm:$0xff]
    %v53 = vld [vmem:[#allocation6 + $0x8] sm:$0xff]
    %v54 = vld [vmem:[%s3] sm:$0x1]
    %v56 = vlaneseq
    %v57 = vshrl.u32 %v56, 7
    %v58 = vsub.s32 0, %v57
    %v59 = vrot.slane %v54, %v58
    %vm61 = vcmask 130048
    %v63 = vsel %vm61, %v51, 0
    %65 = vmatprep.subr.mxu0 0.0
    %66 = vmatpush1.msra.mxu0 %v52
    %67 = vmatprep.subr.mxu0 0.0
    %68 = vmatpush1.msra.mxu0 %v53
    %69 = vmatprep.subr.mxu0 0.0
    %70 = vmatpush1.msra.mxu0 0.0
    %71 = vmatprep.subr.mxu0 0.0
    %72 = vmatpush1.msra.mxu0 0.0
    %73 = vmatprep.subr.mxu0 0.0
    %74 = vmatpush1.msra.mxu0 0.0
    %75 = vmatprep.subr.mxu0 0.0
    %76 = vmatpush1.msra.mxu0 0.0
    %77 = vmatprep.subr.mxu0 0.0
    %78 = vmatpush1.msra.mxu0 0.0
    %79 = vmatprep.subr.mxu0 0.0
    %80 = vmatpush1.msra.mxu0 0.0
    %81 = vmatprep.subr.mxu0 0.0
    %82 = vmatpush1.msra.mxu0 0.0
    %83 = vmatprep.subr.mxu0 0.0
    %84 = vmatpush1.msra.mxu0 0.0
    %85 = vmatprep.subr.mxu0 0.0
    %86 = vmatpush1.msra.mxu0 0.0
    %87 = vmatprep.subr.mxu0 0.0
    %88 = vmatpush1.msra.mxu0 0.0
    %89 = vmatprep.subr.mxu0 0.0
    %90 = vmatpush1.msra.mxu0 0.0
    %91 = vmatprep.subr.mxu0 0.0
    %92 = vmatpush1.msra.mxu0 0.0
    %93 = vmatprep.subr.mxu0 0.0
    %94 = vmatpush1.msra.mxu0 0.0
    %95 = vmatprep.subr.mxu0 0.0
    %96 = vmatpush1.msra.mxu0 0.0
    %97 = vmatprep.subr.mxu0 0.0
    %98 = vmatpush1.msra.mxu0 0.0
    %99 = vmatprep.subr.mxu0 0.0
    %100 = vmatpush1.msra.mxu0 0.0
    %101 = vmatprep.subr.mxu0 0.0
    %102 = vmatpush1.msra.mxu0 0.0
    %103 = vmatprep.subr.mxu0 0.0
    %104 = vmatpush1.msra.mxu0 0.0
    %105 = vmatprep.subr.mxu0 0.0
    %106 = vmatpush1.msra.mxu0 0.0
    %107 = vmatprep.subr.mxu0 0.0
    %108 = vmatpush1.msra.mxu0 0.0
    %109 = vmatprep.subr.mxu0 0.0
    %110 = vmatpush1.msra.mxu0 0.0
    %111 = vmatprep.subr.mxu0 0.0
    %112 = vmatpush1.msra.mxu0 0.0
    %113 = vmatprep.subr.mxu0 0.0
    %114 = vmatpush1.msra.mxu0 0.0
    %115 = vmatprep.subr.mxu0 0.0
    %116 = vmatpush1.msra.mxu0 0.0
    %117 = vmatprep.subr.mxu0 0.0
    %118 = vmatpush1.msra.mxu0 0.0
    %119 = vmatprep.subr.mxu0 0.0
    %120 = vmatpush1.msra.mxu0 0.0
    %121 = vmatprep.subr.mxu0 0.0
    %122 = vmatpush1.msra.mxu0 0.0
    %123 = vmatprep.subr.mxu0 0.0
    %124 = vmatpush1.msra.mxu0 0.0
    %125 = vmatprep.subr.mxu0 0.0
    %126 = vmatpush1.msra.mxu0 0.0
    %127 = vmatprep.subr.mxu0 0.0
    %128 = vmatpush1.msra.mxu0 0.0
    %129 = vmatprep.mubr.f32.mxu0 0.0
    %130 = vmatmul.mubr.f32.gmra.mrb[0].mxu0 %v63
    %v131 = vpop.f32.mrb[0].mxu0
    %v132 = vadd.f32 %v59, %v131
    %v133 = vpop.f32.mrb[0].mxu0
    %134 = vdwg.mxu0
    %s135 = sld [smem:[#allocation2]]
    %v136 = vlaneseq
    %v137 = vshrl.u32 %v136, 7
    %v138 = vlaneseq
    %v139 = vand.u32 %v138, 127
    %v140 = vmul.u32 %v137, 128
    %v141 = vadd.s32 %v140, %v139
    %s142 = smul.u32 %s135, 2654435769
    %v143 = vstv %s142
    %v144 = vadd.s32 %v141, %v143
    %v145 = vshrl.u32 %v144, 16
    %v146 = vxor.u32 %v144, %v145
    %v147 = vmul.u32 %v146, 2246822507
    %v148 = vshrl.u32 %v147, 13
    %v149 = vxor.u32 %v147, %v148
    %v150 = vmul.u32 %v149, 3266489909
    %v151 = vshrl.u32 %v150, 16
    %v152 = vxor.u32 %v150, %v151
    %vm153 = vcmp.ge.u32.totalorder %v152, 2576980378
    %v154 = vsel %vm153, %v132, 0.0
    %v155 = vmax.f32 %v154, 0.0
    %v156 = vld [vmem:[%s4] sm:$0xff]
    %157 = vmatprep.subr.mxu0 0.0
    %158 = vmatpush1.xpose.msra.mxu0 %v156
    %159 = vmatprep.subr.mxu0 0.0
    %160 = vmatpush1.xpose.msra.mxu0 0.0
    %161 = vmatprep.subr.mxu0 0.0
    %162 = vmatpush1.xpose.msra.mxu0 0.0
    %163 = vmatprep.subr.mxu0 0.0
    %164 = vmatpush1.xpose.msra.mxu0 0.0
    %165 = vmatprep.subr.mxu0 0.0
    %166 = vmatpush1.xpose.msra.mxu0 0.0
    %167 = vmatprep.subr.mxu0 0.0
    %168 = vmatpush1.xpose.msra.mxu0 0.0
    %169 = vmatprep.subr.mxu0 0.0
    %170 = vmatpush1.xpose.msra.mxu0 0.0
    %171 = vmatprep.subr.mxu0 0.0
    %172 = vmatpush1.xpose.msra.mxu0 0.0
    %173 = vmatprep.subr.mxu0 0.0
    %174 = vmatpush1.xpose.msra.mxu0 0.0
    %175 = vmatprep.subr.mxu0 0.0
    %176 = vmatpush1.xpose.msra.mxu0 0.0
    %177 = vmatprep.subr.mxu0 0.0
    %178 = vmatpush1.xpose.msra.mxu0 0.0
    %179 = vmatprep.subr.mxu0 0.0
    %180 = vmatpush1.xpose.msra.mxu0 0.0
    %181 = vmatprep.subr.mxu0 0.0
    %182 = vmatpush1.xpose.msra.mxu0 0.0
    %183 = vmatprep.subr.mxu0 0.0
    %184 = vmatpush1.xpose.msra.mxu0 0.0
    %185 = vmatprep.subr.mxu0 0.0
    %186 = vmatpush1.xpose.msra.mxu0 0.0
    %187 = vmatprep.subr.mxu0 0.0
    %188 = vmatpush1.xpose.msra.mxu0 0.0
    %189 = vmatprep.subr.mxu0 0.0
    %190 = vmatpush1.xpose.msra.mxu0 0.0
    %191 = vmatprep.subr.mxu0 0.0
    %192 = vmatpush1.xpose.msra.mxu0 0.0
    %193 = vmatprep.subr.mxu0 0.0
    %194 = vmatpush1.xpose.msra.mxu0 0.0
    %195 = vmatprep.subr.mxu0 0.0
    %196 = vmatpush1.xpose.msra.mxu0 0.0
    %197 = vmatprep.subr.mxu0 0.0
    %198 = vmatpush1.xpose.msra.mxu0 0.0
    %199 = vmatprep.subr.mxu0 0.0
    %200 = vmatpush1.xpose.msra.mxu0 0.0
    %201 = vmatprep.subr.mxu0 0.0
    %202 = vmatpush1.xpose.msra.mxu0 0.0
    %203 = vmatprep.subr.mxu0 0.0
    %204 = vmatpush1.xpose.msra.mxu0 0.0
    %205 = vmatprep.subr.mxu0 0.0
    %206 = vmatpush1.xpose.msra.mxu0 0.0
    %207 = vmatprep.subr.mxu0 0.0
    %208 = vmatpush1.xpose.msra.mxu0 0.0
    %209 = vmatprep.subr.mxu0 0.0
    %210 = vmatpush1.xpose.msra.mxu0 0.0
    %211 = vmatprep.subr.mxu0 0.0
    %212 = vmatpush1.xpose.msra.mxu0 0.0
    %213 = vmatprep.subr.mxu0 0.0
    %214 = vmatpush1.xpose.msra.mxu0 0.0
    %215 = vmatprep.subr.mxu0 0.0
    %216 = vmatpush1.xpose.msra.mxu0 0.0
    %217 = vmatprep.subr.mxu0 0.0
    %218 = vmatpush1.xpose.msra.mxu0 0.0
    %219 = vmatprep.subr.mxu0 0.0
    %220 = vmatpush1.xpose.msra.mxu0 0.0
    %221 = vmatprep.mubr.f32.mxu0 0.0
    %222 = vmatmul.mubr.f32.gmra.mrb[0].mxu0 %v155
    %v223 = vpop.f32.mrb[0].mxu0
    %v224 = vadd.f32 0.0, %v223
    %v225 = vpop.f32.mrb[0].mxu0
    %226 = vdwg.mxu0
    %v227 = vmul.f32 %v224, 2.5
    %v228 = vld [vmem:[%s5] sm:$0x1]
    %v230 = vlaneseq
    %v231 = vshrl.u32 %v230, 7
    %v232 = vsub.s32 0, %v231
    %v233 = vrot.slane %v228, %v232
    %v235 = vadd.f32 %v227, %v233
    %vm236 = vcmask 64512
    %237 = vst.msk [vmem:[#allocation8] sm:$0xff] %vm236, %v235
    // Predicated region
    $region34: #{policy_forward.1} parent=1 // pred_check
      _
    $region35: #{policy_forward.1} parent=1 // pred_check_branch
      %239 = sbr.rel (0) target = $region37
    $region36: #{policy_forward.1} parent=1 // pred_region
      %s241 = ssub.s32 128, 128
      %242 = vsyncadd [#allocation5], %s241
      %s244 = sshll.u32 [#allocation8], 4
      %s245 = int_to_ptr.vmem [resolvable:$true] %s244
      %247 = dma.vmem_to_hbm [thread:$0]  %s245, 128, %s6, [#allocation5]
    $region37: #{policy_forward.1} parent=1 // pred_fallthru
      _
    // Predicated region
    $region38: #{policy_forward.1} parent=1 // pred_check
      _
    $region39: #{policy_forward.1} parent=1 // pred_check_branch
      %249 = sbr.rel (0) target = $region41
    $region40: #{policy_forward.1} parent=1 // pred_region
      %250 = dma.done [#allocation5], 128
    $region41: #{policy_forward.1} parent=1 // pred_fallthru
      _
    %251 = vsyncpa [#allocation4], 1
    %252 = vsyncpa [#allocation7], 1
    %253 = vsyncpa [#allocation5], 1

</llo_original>
